<compile_context>
chip_gen: v5e
topology: v5e:2x2
jax: 0.10.0
libtpu: 0.0.40
codegen_flags: <defaults>
</compile_context>

<pallas_src>
import math

import jax
import jax.numpy as jnp
from jax import lax
from jax.experimental import pallas as pl
from jax.experimental.pallas import tpu as pltpu


def _round_up(x, m):
    return ((x + m - 1) // m) * m


def _sublane(dtype):
    # sublane packing of one vreg: 8 rows of f32, 16 of bf16, 32 of int8/fp8
    return max(8, 32 // max(1, jnp.dtype(dtype).itemsize))


def _make_kernel(has_bias: bool, multi_k: bool):
    """Build the kernel body for (bias / no-bias) x (K-tiled / single-K)."""

    def kernel(*refs):
        if multi_k:
            acc_ref = refs[-1]
            refs = refs[:-1]
        if has_bias:
            x_ref, w_ref, b_ref, o_ref = refs
        else:
            x_ref, w_ref, o_ref = refs

        # x @ W.T on the MXU: contract x's last dim with W's last dim
        # (weight stays in its native (out_dim, in_dim) layout).
        part = lax.dot_general(
            x_ref[...], w_ref[...],
            dimension_numbers=(((1,), (1,)), ((), ())),
            preferred_element_type=jnp.float32,
        )

        if not multi_k:
            # Single K step: no accumulator scratch, write straight out.
            if has_bias:
                part = part + b_ref[...].astype(jnp.float32)
            o_ref[...] = part.astype(o_ref.dtype)
            return

        k = pl.program_id(2)

        @pl.when(k == 0)
        def _():
            # Fold the bias into the first write -> no separate zero-init pass.
            if has_bias:
                acc_ref[...] = part + b_ref[...].astype(jnp.float32)
            else:
                acc_ref[...] = part

        @pl.when(k > 0)
        def _():
            acc_ref[...] += part

        @pl.when(k == pl.num_programs(2) - 1)
        def _():
            o_ref[...] = acc_ref[...].astype(o_ref.dtype)

    return kernel


def linear_pallas(x, weight, bias=None, *,
                  tm_target=512, tn_target=512, tk_cap=2048,
                  tile_vmem_budget=40 * 1024 * 1024,
                  vmem_limit_bytes=48 * 1024 * 1024):
    """y = x @ weight.T + bias  (PyTorch nn.Linear semantics).

    x      : (..., in_dim)
    weight : (out_dim, in_dim)
    bias   : (out_dim,) or None
    returns: (..., out_dim)
    """
    in_dim = x.shape[-1]
    out_dim = weight.shape[0]
    lead_shape = x.shape[:-1]
    out_dtype = x.dtype
    has_bias = bias is not None

    x2d = x.reshape(-1, in_dim)
    M = x2d.shape[0]

    # ---- N: lane-dense output -> pad out_dim to a multiple of 128 (weights /
    # bias only; no activation traffic).
    n_pad = _round_up(out_dim, 128)
    if n_pad != out_dim:
        weight = jnp.pad(weight, ((0, n_pad - out_dim), (0, 0)))
        if has_bias:
            bias = jnp.pad(bias, (0, n_pad - out_dim))

    # ---- K: cap the tile at tk_cap; pad K to a 128 multiple only when the
    # reduction is both large and ragged (zeros are harmless in the dot).
    if in_dim <= tk_cap:
        tk_eff = in_dim
        k_pad = in_dim
    else:
        k_pad = _round_up(in_dim, 128)
        tk_eff = 128
        for cand in range(tk_cap - tk_cap % 128, 127, -128):
            if k_pad % cand == 0:
                tk_eff = cand
                break
        if k_pad != in_dim:
            x2d = jnp.pad(x2d, ((0, 0), (0, k_pad - in_dim)))
            weight = jnp.pad(weight, ((0, 0), (0, k_pad - in_dim)))

    # ---- M: balanced tiles, rounded to the dtype's sublane packing.
    sub = _sublane(x.dtype)
    if M <= tm_target:
        tm_eff = _round_up(M, sub)
    else:
        m_blocks = pl.cdiv(M, tm_target)
        tm_eff = _round_up(pl.cdiv(M, m_blocks), sub)

    # ---- VMEM footprint model (double-buffered inputs/outputs + f32 acc).
    xi = x2d.dtype.itemsize
    wi = weight.dtype.itemsize
    oi = jnp.dtype(out_dtype).itemsize

    def footprint(tm_, tn_, tk_):
        f = 2 * (tm_ * tk_ * xi + tn_ * tk_ * wi + tm_ * tn_ * oi)
        if has_bias:
            f += 2 * tn_ * wi
        if k_pad // tk_ > 1:
            f += tm_ * tn_ * 4  # accumulator scratch
        return f

    # ---- Weight-resident fast path: whole (padded) weight in VMEM, constant
    # weight block index -> W fetched from HBM exactly once.
    if footprint(tm_eff, n_pad, k_pad) <= tile_vmem_budget:
        tn_eff = n_pad
        tk_eff = k_pad
    else:
        tn_eff = min(tn_target, n_pad)
        while footprint(tm_eff, tn_eff, tk_eff) > tile_vmem_budget:
            half_tk = tk_eff // 2
            if (tk_eff > 512 and half_tk % 128 == 0 and k_pad % half_tk == 0):
                tk_eff = half_tk
            elif tn_eff > 128:
                tn_eff = _round_up(tn_eff // 2, 128)
            elif tm_eff > sub:
                tm_eff = _round_up(max(1, tm_eff // 2), sub)
            else:
                break

    # ---- v7x megacore: make sure both TensorCores get at least one tile.
    while pl.cdiv(M, tm_eff) * pl.cdiv(n_pad, tn_eff) < 2:
        if tn_eff > 128:
            tn_eff = _round_up(tn_eff // 2, 128)
        elif tm_eff > sub:
            tm_eff = _round_up(max(1, tm_eff // 2), sub)
        else:
            break

    k_steps = k_pad // tk_eff
    multi_k = k_steps > 1
    grid_m = pl.cdiv(M, tm_eff)
    grid_n = pl.cdiv(n_pad, tn_eff)

    kernel = _make_kernel(has_bias, multi_k)

    if multi_k:
        x_map = lambda i, j, k: (i, k)
        w_map = lambda i, j, k: (j, k)
        b_map = lambda i, j, k: (0, j)
        o_map = lambda i, j, k: (i, j)
        grid = (grid_m, grid_n, k_steps)
        scratch = [pltpu.VMEM((tm_eff, tn_eff), jnp.float32)]
        dims = ("parallel", "parallel", "arbitrary")
    else:
        x_map = lambda i, j: (i, 0)
        w_map = lambda i, j: (j, 0)
        b_map = lambda i, j: (0, j)
        o_map = lambda i, j: (i, j)
        grid = (grid_m, grid_n)
        scratch = []
        dims = ("parallel", "parallel")

    in_specs = [
        pl.BlockSpec((tm_eff, tk_eff), x_map),   # activations
        pl.BlockSpec((tn_eff, tk_eff), w_map),   # weight (out_dim x in_dim)
    ]
    args = [x2d, weight]
    if has_bias:
        in_specs.append(pl.BlockSpec((1, tn_eff), b_map))
        args.append(bias.reshape(1, n_pad))

    out = pl.pallas_call(
        kernel,
        out_shape=jax.ShapeDtypeStruct((M, n_pad), out_dtype),
        grid_spec=pltpu.PrefetchScalarGridSpec(
            num_scalar_prefetch=0,
            grid=grid,
            in_specs=in_specs,
            out_specs=pl.BlockSpec((tm_eff, tn_eff), o_map),
            scratch_shapes=scratch,
        ),
        compiler_params=pltpu.CompilerParams(
            dimension_semantics=dims,
            vmem_limit_bytes=vmem_limit_bytes,
        ),
    )(*args)

    if n_pad != out_dim:
        out = out[:, :out_dim]
    return out.reshape(*lead_shape, out_dim)


def init_linear_params(key, in_dim, out_dim, dtype=jnp.float32):
    """Deterministic init matching the PyTorch module:
    - weight: xavier_uniform with gain = calculate_gain('linear') = 1.0
    - bias:   nn.Linear default, U(-1/sqrt(fan_in), 1/sqrt(fan_in))
    """
    kw, kb = jax.random.split(key)
    gain = 1.0
    w_bound = gain * math.sqrt(6.0 / (in_dim + out_dim))
    weight = jax.random.uniform(kw, (out_dim, in_dim), dtype,
                                minval=-w_bound, maxval=w_bound)
    b_bound = 1.0 / math.sqrt(in_dim)
    bias = jax.random.uniform(kb, (out_dim,), dtype,
                              minval=-b_bound, maxval=b_bound)
    return weight, bias


if __name__ == "__main__":
    key = jax.random.PRNGKey(0)
    k_x, k_p = jax.random.split(key)

    batch, seq, in_dim, out_dim = 2, 8, 32, 64
    x = jax.random.normal(k_x, (batch, seq, in_dim), dtype=jnp.float32)
    weight, bias = init_linear_params(k_p, in_dim, out_dim)

    y = linear_pallas(x, weight, bias)
    y = jax.block_until_ready(y)

    # sanity check against plain-JAX reference
    y_ref = x @ weight.T + bias
    assert y.shape == (batch, seq, out_dim)
    assert jnp.allclose(y, y_ref, atol=1e-5, rtol=1e-5)

    # also exercise the bias=None path
    y_nb = jax.block_until_ready(linear_pallas(x, weight, None))
    assert jnp.allclose(y_nb, x @ weight.T, atol=1e-5, rtol=1e-5)

    print("KERNEL_OK")
</pallas_src>

<mosaic_0001>
module attributes {stable_mosaic.version = 11 : i64} {
  func.func @kernel(%arg0: i32, %arg1: i32, %arg2: memref<8x32xf32, #tpu.memory_space<vmem>>, %arg3: memref<128x32xf32, #tpu.memory_space<vmem>>, %arg4: memref<1x128xf32, #tpu.memory_space<vmem>>, %arg5: memref<8x128xf32, #tpu.memory_space<vmem>>) attributes {dimension_semantics = [#tpu.dimension_semantics<parallel>, #tpu.dimension_semantics<parallel>], iteration_bounds = array<i64: 2, 1>, scalar_prefetch = 0 : i64, scratch_operands = 0 : i64, tpu.core_type = #tpu.core_type<tc>, window_params = [{transform_indices = @transform_0, window_bounds = array<i64: 8, 32>}, {transform_indices = @transform_1, window_bounds = array<i64: 128, 32>}, {transform_indices = @transform_2, window_bounds = array<i64: 1, 128>}, {transform_indices = @transform_3, window_bounds = array<i64: 8, 128>}]} {
    %c0 = arith.constant 0 : index
    %c0_0 = arith.constant 0 : index
    %0 = vector.load %arg2[%c0, %c0_0] : memref<8x32xf32, #tpu.memory_space<vmem>>, vector<8x32xf32>
    %c0_1 = arith.constant 0 : index
    %c0_2 = arith.constant 0 : index
    %1 = vector.load %arg3[%c0_1, %c0_2] : memref<128x32xf32, #tpu.memory_space<vmem>>, vector<128x32xf32>
    %cst = arith.constant dense<0.000000e+00> : vector<8x128xf32>
    %2 = tpu.matmul %0, %1, %cst {dimension_numbers = #tpu.dot_dimension_numbers<[1], [1], [0], [0], [0, 0, 1, 0], [], []>} : vector<8x32xf32>, vector<128x32xf32>, vector<8x128xf32> -> vector<8x128xf32>
    %c0_3 = arith.constant 0 : index
    %c0_4 = arith.constant 0 : index
    %3 = vector.load %arg4[%c0_3, %c0_4] : memref<1x128xf32, #tpu.memory_space<vmem>>, vector<1x128xf32>
    %4 = vector.broadcast %3 : vector<1x128xf32> to vector<8x128xf32>
    %5 = arith.addf %2, %4 : vector<8x128xf32>
    %c0_5 = arith.constant 0 : index
    %c0_6 = arith.constant 0 : index
    %6 = vector.load %arg5[%c0_5, %c0_6] : memref<8x128xf32, #tpu.memory_space<vmem>>, vector<8x128xf32>
    tpu.vector_store %arg5[%c0_5, %c0_6], %5 {strides = array<i32>} : memref<8x128xf32, #tpu.memory_space<vmem>>, vector<8x128xf32>,
    return
  }
  func.func @transform_0(%arg0: i32, %arg1: i32) -> (i32, i32) {
    %c0_i32 = arith.constant 0 : i32
    %c0_i32_0 = arith.constant 0 : i32
    return %arg0, %c0_i32 : i32, i32
  }
  func.func @transform_1(%arg0: i32, %arg1: i32) -> (i32, i32) {
    %c0_i32 = arith.constant 0 : i32
    %c0_i32_0 = arith.constant 0 : i32
    return %arg1, %c0_i32 : i32, i32
  }
  func.func @transform_2(%arg0: i32, %arg1: i32) -> (i32, i32) {
    %c0_i32 = arith.constant 0 : i32
    %c0_i32_0 = arith.constant 0 : i32
    return %c0_i32, %arg1 : i32, i32
  }
  func.func @transform_3(%arg0: i32, %arg1: i32) -> (i32, i32) {
    %c0_i32 = arith.constant 0 : i32
    return %arg0, %arg1 : i32, i32
  }
}

</mosaic_0001>

<llo_original>
// kernel: tpu_custom_call.1
$region0: #{tpu_custom_call.1}
  #allocation0 [shape = 'u32[]', space=smem, size = 0x4, offset = 0x4, fixed_abs, tag = 'smem constant byte address 0x4 - core index']
  #allocation1 [shape = 'u32[72,128]{1,0:T(1,128)}', space=vmem, size = 0x9000, scoped, tag = 'internal scratch']
  %s0 = inlined_call_operand.vmem [shape: f32[16,32], index: 0, kind: input, shape index: {}]
  %s1 = inlined_call_operand.vmem [shape: f32[128,32], index: 1, kind: input, shape index: {}]
  %s2 = inlined_call_operand.vmem [shape: f32[1,128], index: 2, kind: input, shape index: {}]
  %s3 = inlined_call_operand.hbm [shape: f32[16,128], index: 3, kind: output, shape index: {}]
  %s4 = sld [smem:[#allocation0]]
  $region45: #{tpu_custom_call.1} parent=0
    _
  %s6 = ssub.s32 1, %s4
  %s7 = scalar_select 0, %s6, %s4
  $region1: #{tpu_custom_call.1} parent=0
    #allocation2 [shape = 'u8[8192]{0}', space=vmem, size = 0x2000, scoped, tag = 'output window, operand 0']
    #allocation3 [shape = 's32[2]{0}', space=sflag, size = 0x8, scoped, tag = 'scoped memory for tpu_custom_call.1']
    %8 = vsyncpa [#allocation3], 0
    %s9 = scalar_lea.sflag [#allocation3], 1
    %10 = vsyncpa %s9, 0
    loop: start=0, step=1, limit=4
    $region2: #{tpu_custom_call.1} parent=1 // loop_pre_header
      _
    $region3: #{tpu_custom_call.1} parent=1 // loop_header
      %s12 = sphi 0, %s16
      %p13 = scmp.ge.s32.totalorder %s12, 4
      %s19 = sphi 0, %s31
      %s20 = sphi 0, %s27
      %s21 = sphi 0, %s19
      %s22 = sphi 0, %s20
      %s23 = sphi 0, %s21
      %s24 = sphi 0, %s22
      %s34 = sphi 0, %s36
      %s37 = sphi 0, %s34
      %s38 = sphi 0, %s37
      %s54 = sphi 0, %s38
      %s60 = sphi 0, %s62
      %s63 = sphi 0, %s60
      %s64 = sphi 0, %s63
      %s80 = sphi 0, %s64
      %s86 = sphi 0, %s88
      %s89 = sphi 0, %s86
      %s90 = sphi 0, %s89
      %s106 = sphi 0, %s90
      %s114 = sphi 0, %s116
      %s117 = sphi 0, %s114
      %s118 = sphi 0, %s117
      %s134 = sphi 0, %s118
    $region4: #{tpu_custom_call.1} parent=1 // loop_header_branch
      %15 = sbr.rel (%p13) target = $region8
    $region5: #{tpu_custom_call.1} parent=1 // loop_body
      %s17 = ssub.s32 %s12, 1
      %s18 = ssub.s32 %s12, 2
      %s25 = sadd.s32 1, %s20
      %p26 = scmp.ge.s32.totalorder %s25, 1
      %s27 = scalar_select %p26, 0, %s25
      %s28 = sadd.s32 1, %s19
      %s29 = scalar_select %p26, %s28, %s19
      %p30 = scmp.ge.s32.totalorder %s29, 2
      %s31 = scalar_select %p30, 0, %s29
      %s32 = ssub.s32 %s19, %s31
      %p33 = scmp.eq.s32.totalorder %s32, 0
      %s35 = sadd.s32 %s34, 1
      %s36 = scalar_select %p33, %s34, %s35
      %p39 = pneg %p33
      %p40 = scmp.eq.s32.totalorder %s12, 1
      %p41 = por %p39, %p40
      %p42 = scmp.ne.s32.totalorder %s34, %s37
      %p43 = scmp.eq.s32.totalorder %s12, 0
      %p44 = por %p42, %p43
      %p45 = scmp.ne.s32.totalorder %s34, %s37
      %p46 = scmp.eq.s32.totalorder %s17, 1
      %p47 = por %p45, %p46
      %p48 = scmp.ne.s32.totalorder %s37, %s38
      %p49 = scmp.eq.s32.totalorder %s17, 0
      %p50 = por %p48, %p49
      %p51 = scmp.ne.s32.totalorder %s37, %s38
      %p52 = scmp.eq.s32.totalorder %s18, 1
      %p53 = por %p51, %p52
      %p55 = scmp.ne.s32.totalorder %s38, %s54
      %p56 = scmp.eq.s32.totalorder %s18, 0
      %p57 = por %p55, %p56
      %s58 = ssub.s32 %s20, %s27
      %p59 = scmp.eq.s32.totalorder %s58, 0
      %s61 = sadd.s32 %s60, 1
      %s62 = scalar_select %p59, %s60, %s61
      %p65 = pneg %p59
      %p66 = scmp.eq.s32.totalorder %s12, 1
      %p67 = por %p65, %p66
      %p68 = scmp.ne.s32.totalorder %s60, %s63
      %p69 = scmp.eq.s32.totalorder %s12, 0
      %p70 = por %p68, %p69
      %p71 = scmp.ne.s32.totalorder %s60, %s63
      %p72 = scmp.eq.s32.totalorder %s17, 1
      %p73 = por %p71, %p72
      %p74 = scmp.ne.s32.totalorder %s63, %s64
      %p75 = scmp.eq.s32.totalorder %s17, 0
      %p76 = por %p74, %p75
      %p77 = scmp.ne.s32.totalorder %s63, %s64
      %p78 = scmp.eq.s32.totalorder %s18, 1
      %p79 = por %p77, %p78
      %p81 = scmp.ne.s32.totalorder %s64, %s80
      %p82 = scmp.eq.s32.totalorder %s18, 0
      %p83 = por %p81, %p82
      %s84 = ssub.s32 %s20, %s27
      %p85 = scmp.eq.s32.totalorder %s84, 0
      %s87 = sadd.s32 %s86, 1
      %s88 = scalar_select %p85, %s86, %s87
      %p91 = pneg %p85
      %p92 = scmp.eq.s32.totalorder %s12, 1
      %p93 = por %p91, %p92
      %p94 = scmp.ne.s32.totalorder %s86, %s89
      %p95 = scmp.eq.s32.totalorder %s12, 0
      %p96 = por %p94, %p95
      %p97 = scmp.ne.s32.totalorder %s86, %s89
      %p98 = scmp.eq.s32.totalorder %s17, 1
      %p99 = por %p97, %p98
      %p100 = scmp.ne.s32.totalorder %s89, %s90
      %p101 = scmp.eq.s32.totalorder %s17, 0
      %p102 = por %p100, %p101
      %p103 = scmp.ne.s32.totalorder %s89, %s90
      %p104 = scmp.eq.s32.totalorder %s18, 1
      %p105 = por %p103, %p104
      %p107 = scmp.ne.s32.totalorder %s90, %s106
      %p108 = scmp.eq.s32.totalorder %s18, 0
      %p109 = por %p107, %p108
      %s110 = ssub.s32 %s19, %s31
      %s111 = ssub.s32 %s20, %s27
      %s112 = sor.u32 %s110, %s111
      %p113 = scmp.eq.s32.totalorder %s112, 0
      %s115 = sadd.s32 %s114, 1
      %s116 = scalar_select %p113, %s114, %s115
      %p119 = pneg %p113
      %p120 = scmp.eq.s32.totalorder %s12, 1
      %p121 = por %p119, %p120
      %p122 = scmp.ne.s32.totalorder %s114, %s117
      %p123 = scmp.eq.s32.totalorder %s12, 0
      %p124 = por %p122, %p123
      %p125 = scmp.ne.s32.totalorder %s114, %s117
      %p126 = scmp.eq.s32.totalorder %s17, 1
      %p127 = por %p125, %p126
      %p128 = scmp.ne.s32.totalorder %s117, %s118
      %p129 = scmp.eq.s32.totalorder %s17, 0
      %p130 = por %p128, %p129
      %p131 = scmp.ne.s32.totalorder %s117, %s118
      %p132 = scmp.eq.s32.totalorder %s18, 1
      %p133 = por %p131, %p132
      %p135 = scmp.ne.s32.totalorder %s118, %s134
      %p136 = scmp.eq.s32.totalorder %s18, 0
      %p137 = por %p135, %p136
      %p138 = scmp.le.s32.totalorder 1, %s12
      %p139 = scmp.lt.s32.totalorder %s12, 3
      %p140 = pnand %p138, %p139
      %p141 = pneg %p140
      // Predicated region
      $region9: #{tpu_custom_call.1} parent=5 // pred_check
        _
      $region10: #{tpu_custom_call.1} parent=5 // pred_check_branch
        %143 = sbr.rel (%p140) target = $region12
      $region11: #{tpu_custom_call.1} parent=5 // pred_region
        %s144 = ssub.s32 %s12, 1
        // Predicated region
        $region13: #{tpu_custom_call.1} parent=11 // pred_check
          %p145 = pneg %p76
        $region14: #{tpu_custom_call.1} parent=11 // pred_check_branch
          %147 = sbr.rel (%p145) target = $region16
        $region15: #{tpu_custom_call.1} parent=11 // pred_region
          %s148 = smul.u32 16, %s22
          %p149 = scmp.lt.s32.totalorder %s148, 15
          %s150 = scalar_select %p149, %s148, 15
          %s151 = smul.addr %s150, 8
          %s152 = scalar_lea.vmem %s1, %s151
          %s153 = smul.u32 16, %s22
        $region16: #{tpu_custom_call.1} parent=11 // pred_fallthru
          _
        // Predicated region
        $region17: #{tpu_custom_call.1} parent=11 // pred_check
          %p154 = pneg %p102
        $region18: #{tpu_custom_call.1} parent=11 // pred_check_branch
          %156 = sbr.rel (%p154) target = $region20
        $region19: #{tpu_custom_call.1} parent=11 // pred_region
          %p157 = scmp.lt.s32.totalorder %s22, 0
          %s158 = scalar_select %p157, %s22, 0
          %s159 = scalar_lea.vmem %s2, %s158
        $region20: #{tpu_custom_call.1} parent=11 // pred_fallthru
          _
      $region12: #{tpu_custom_call.1} parent=5 // pred_fallthru
        _
      %p160 = scmp.lt.s32.totalorder %s12, 2
      // Predicated region
      $region21: #{tpu_custom_call.1} parent=5 // pred_check
        %p161 = pneg %p160
      $region22: #{tpu_custom_call.1} parent=5 // pred_check_branch
        %163 = sbr.rel (%p161) target = $region24
      $region23: #{tpu_custom_call.1} parent=5 // pred_region
        // Predicated region
        $region25: #{tpu_custom_call.1} parent=23 // pred_check
          %p164 = pneg %p44
        $region26: #{tpu_custom_call.1} parent=23 // pred_check_branch
          %166 = sbr.rel (%p164) target = $region28
        $region27: #{tpu_custom_call.1} parent=23 // pred_region
          %p167 = scmp.lt.s32.totalorder %s19, 1
          %s168 = scalar_select %p167, %s19, 1
          %s169 = smul.addr %s168, 8
          %s170 = scalar_lea.vmem %s0, %s169
        $region28: #{tpu_custom_call.1} parent=23 // pred_fallthru
          _
      $region24: #{tpu_custom_call.1} parent=5 // pred_fallthru
        _
      %p171 = scmp.le.s32.totalorder 1, %s12
      %p172 = scmp.lt.s32.totalorder %s12, 3
      %p173 = pnand %p171, %p172
      %p174 = pneg %p173
      // Predicated region
      $region29: #{tpu_custom_call.1} parent=5 // pred_check
        _
      $region30: #{tpu_custom_call.1} parent=5 // pred_check_branch
        %176 = sbr.rel (%p173) target = $region32
      $region31: #{tpu_custom_call.1} parent=5 // pred_region
        %s177 = ssub.s32 %s12, 1
        %p178 = scmp.lt.s32.totalorder %s21, 1
        %s179 = scalar_select %p178, %s21, 1
        %s180 = smul.addr %s179, 8
        %s181 = scalar_lea.vmem %s0, %s180
        %p182 = pneg %p50
        %p183 = pneg %p47
        %s184 = smul.u32 16, %s22
        %p185 = scmp.lt.s32.totalorder %s184, 15
        %s186 = scalar_select %p185, %s184, 15
        %s187 = smul.addr %s186, 8
        %s188 = scalar_lea.vmem %s1, %s187
        %p189 = pneg %p76
        %p190 = pneg %p73
        %p191 = scmp.lt.s32.totalorder %s22, 0
        %s192 = scalar_select %p191, %s22, 0
        %s193 = scalar_lea.vmem %s2, %s192
        %p194 = pneg %p102
        %p195 = pneg %p99
        %p196 = pneg %p130
        %p197 = pneg %p127
        %s198 = sand.u32 %s117, 1
        %s199 = scalar_lea.sflag [#allocation3], %s198
        %s200 = sand.u32 %s117, 1
        %s201 = smul.addr %s200, 8
        %s202 = scalar_lea.vmem [#allocation2], %s201
        %p203 = scmp.lt.s32.totalorder %s21, 1
        %s204 = scalar_select %p203, %s21, 1
        %s205 = smul.addr %s204, 8
        %s206 = scalar_lea.vmem %s0, %s205
        %s207 = smul.u32 16, %s22
        %p208 = scmp.lt.s32.totalorder %s207, 15
        %s209 = scalar_select %p208, %s207, 15
        %s210 = smul.addr %s209, 8
        %s211 = scalar_lea.vmem %s1, %s210
        %s212 = smul.u32 16, %s22
        %p213 = scmp.lt.s32.totalorder %s22, 0
        %s214 = scalar_select %p213, %s22, 0
        %s215 = scalar_lea.vmem %s2, %s214
        %v216 = vld [vmem:[%s206] sm:$0xff]
        %v217 = vld [vmem:[%s211] sm:$0xff]
        %v218 = vld [vmem:[%s211 + $0x8] sm:$0xff]
        %v219 = vld [vmem:[%s211 + $0x10] sm:$0xff]
        %v220 = vld [vmem:[%s211 + $0x18] sm:$0xff]
        %v221 = vld [vmem:[%s211 + $0x20] sm:$0xff]
        %v222 = vld [vmem:[%s211 + $0x28] sm:$0xff]
        %v223 = vld [vmem:[%s211 + $0x30] sm:$0xff]
        %v224 = vld [vmem:[%s211 + $0x38] sm:$0xff]
        %v225 = vld [vmem:[%s211 + $0x40] sm:$0xff]
        %v226 = vld [vmem:[%s211 + $0x48] sm:$0xff]
        %v227 = vld [vmem:[%s211 + $0x50] sm:$0xff]
        %v228 = vld [vmem:[%s211 + $0x58] sm:$0xff]
        %v229 = vld [vmem:[%s211 + $0x60] sm:$0xff]
        %v230 = vld [vmem:[%s211 + $0x68] sm:$0xff]
        %v231 = vld [vmem:[%s211 + $0x70] sm:$0xff]
        %v232 = vld [vmem:[%s211 + $0x78] sm:$0xff]
        %v233 = vld [vmem:[%s215] sm:$0x1]
        %v235 = vperm.slane %v233, 0
        %vm237 = vcmask 261120
        %v239 = vsel %vm237, %v216, 0
        %v242 = vsel %vm237, %v217, 0
        %v245 = vsel %vm237, %v218, 0
        %v248 = vsel %vm237, %v219, 0
        %v251 = vsel %vm237, %v220, 0
        %v254 = vsel %vm237, %v221, 0
        %v257 = vsel %vm237, %v222, 0
        %v260 = vsel %vm237, %v223, 0
        %v263 = vsel %vm237, %v224, 0
        %v266 = vsel %vm237, %v225, 0
        %v269 = vsel %vm237, %v226, 0
        %v272 = vsel %vm237, %v227, 0
        %v275 = vsel %vm237, %v228, 0
        %v278 = vsel %vm237, %v229, 0
        %v281 = vsel %vm237, %v230, 0
        %v284 = vsel %vm237, %v231, 0
        %v287 = vsel %vm237, %v232, 0
        %289 = vmatpush.xpose.msra.mxu0 %v287
        %290 = vmatpush.xpose.msra.mxu0 %v284
        %291 = vmatpush.xpose.msra.mxu0 %v281
        %292 = vmatpush.xpose.msra.mxu0 %v278
        %293 = vmatpush.xpose.msra.mxu0 %v275
        %294 = vmatpush.xpose.msra.mxu0 %v272
        %295 = vmatpush.xpose.msra.mxu0 %v269
        %296 = vmatpush.xpose.msra.mxu0 %v266
        %297 = vmatpush.xpose.msra.mxu0 %v263
        %298 = vmatpush.xpose.msra.mxu0 %v260
        %299 = vmatpush.xpose.msra.mxu0 %v257
        %300 = vmatpush.xpose.msra.mxu0 %v254
        %301 = vmatpush.xpose.msra.mxu0 %v251
        %302 = vmatpush.xpose.msra.mxu0 %v248
        %303 = vmatpush.xpose.msra.mxu0 %v245
        %304 = vmatpush.xpose.msra.mxu0 %v242
        %305 = vmatmul.f32.gmra.mxu0 %v239
        %v306 = vpop.f32.mrf.mxu0
        %v307 = vadd.f32 %v235, %v306
        %308 = vdwg.mxu0
        %309 = vst [vmem:[%s202] sm:$0xff] %v307
        %s310 = sand.u32 %s117, 1
        %s311 = scalar_lea.sflag [#allocation3], %s310
        %s312 = sand.u32 %s117, 1
        %s313 = smul.addr %s312, 8
        %s314 = scalar_lea.vmem [#allocation2], %s313
        // Predicated region
        $region33: #{tpu_custom_call.1} parent=31 // pred_check
          %p315 = pneg %p127
        $region34: #{tpu_custom_call.1} parent=31 // pred_check_branch
          %317 = sbr.rel (%p315) target = $region36
        $region35: #{tpu_custom_call.1} parent=31 // pred_region
          %319 = vsyncadd %s311, 0
          %s320 = sadd.s32 %s22, %s21
          %s321 = smul.addr %s320, 8
          %s322 = scalar_lea.hbm %s3, %s321
          %s324 = sshll.u32 %s314, 4
          %s325 = int_to_ptr.vmem [resolvable:$true] %s324
          %s326 = sshll.u32 %s322, 4
          %s327 = int_to_ptr.hbm [resolvable:$true] %s326
          %329 = dma.vmem_to_hbm [thread:$0]  %s325, 128, %s327, %s311
        $region36: #{tpu_custom_call.1} parent=31 // pred_fallthru
          _
      $region32: #{tpu_custom_call.1} parent=5 // pred_fallthru
        _
      %p330 = scmp.le.s32.totalorder 2, %s12
      // Predicated region
      $region37: #{tpu_custom_call.1} parent=5 // pred_check
        %p331 = pneg %p330
      $region38: #{tpu_custom_call.1} parent=5 // pred_check_branch
        %333 = sbr.rel (%p331) target = $region40
      $region39: #{tpu_custom_call.1} parent=5 // pred_region
        %s334 = ssub.s32 %s12, 2
        // Predicated region
        $region41: #{tpu_custom_call.1} parent=39 // pred_check
          %p335 = pneg %p133
        $region42: #{tpu_custom_call.1} parent=39 // pred_check_branch
          %337 = sbr.rel (%p335) target = $region44
        $region43: #{tpu_custom_call.1} parent=39 // pred_region
          %s338 = sand.u32 %s118, 1
          %s339 = scalar_lea.sflag [#allocation3], %s338
          %s340 = sand.u32 %s118, 1
          %s341 = smul.addr %s340, 8
          %s342 = scalar_lea.vmem [#allocation2], %s341
          %344 = dma.done %s339, 128
        $region44: #{tpu_custom_call.1} parent=39 // pred_fallthru
          _
      $region40: #{tpu_custom_call.1} parent=5 // pred_fallthru
        _
    $region6: #{tpu_custom_call.1} parent=1 // loop_footer
      %s16 = sadd.s32 1, %s12
    $region7: #{tpu_custom_call.1} parent=1 // loop_footer_branch
      %11 = sbr.rel target = $region3
    $region8: #{tpu_custom_call.1} parent=1 // loop_exit
      _
    %345 = vsyncpa [#allocation3], 1
    %s346 = scalar_lea.sflag [#allocation3], 1
    %347 = vsyncpa %s346, 1

</llo_original>
